<compile_context>
chip_gen: v5e
topology: v5e:2x2
jax: 0.10.0
libtpu: 0.0.40
codegen_flags: <defaults>
</compile_context>

<pallas_src>
import math
import functools

import jax
import jax.numpy as jnp
from jax import lax
from jax.experimental import pallas as pl
from jax.experimental.pallas import tpu as pltpu


# ----------------------------------------------------------------------------
# Kernel
# ----------------------------------------------------------------------------
def encoder_layer_kernel(x_ref, mask_ref, wqkv_ref, wo_ref, w1_ref, w2_ref,
                         out_ref, attn_ref, *, n_heads, d_k, d_v,
                         dff_tile=None, eps=1e-5, approx_recip=False):
    Bt, S, _ = mask_ref.shape            # batch block, seq len
    rows, D = x_ref.shape                # rows = Bt * S (token-major)
    H = n_heads
    w_head = 2 * d_k + d_v               # per-head fused [q | k | v] width
    cdt = wqkv_ref.dtype                 # MXU operand dtype (f32 or bf16)

    x2d = x_ref[...].astype(jnp.float32)                       # (Bt*S, D)

    # ---- fused, head-major QKV projection: one wide MXU matmul ---------------
    qkv = jnp.dot(x2d.astype(cdt), wqkv_ref[...],
                  preferred_element_type=jnp.float32)           # (Bt*S, H*w_head)

    # One per-head slice + one stack for q,k,v together (head-major columns),
    # then cheap leading-dim merge + static lane splits.
    chunks = [qkv[:, h * w_head:(h + 1) * w_head].reshape(Bt, S, w_head)
              for h in range(H)]
    qkvh = jnp.stack(chunks, axis=1).reshape(Bt * H, S, w_head)  # (Bt*H, S, w)
    qh = qkvh[..., :d_k]
    kh = qkvh[..., d_k:2 * d_k]
    vh = qkvh[..., 2 * d_k:]

    # ---- scaled dot-product attention, all heads batched ---------------------
    scale = 1.0 / math.sqrt(d_k)
    scores = jnp.einsum("bqd,bkd->bqk", qh.astype(cdt), kh.astype(cdt),
                        preferred_element_type=jnp.float32) * scale
    scores = scores.reshape(Bt, H, S, S)                         # leading split only

    masked = mask_ref[...] > 0                                   # single compare (Bt,S,S)
    # exact masked_fill(-1e9) semantics; implicit broadcast over heads
    scores = jnp.where(masked[:, None, :, :], jnp.float32(-1000000000.0), scores)

    m = jnp.max(scores, axis=-1, keepdims=True)
    e = jnp.exp(scores - m)
    denom = jnp.sum(e, axis=-1, keepdims=True)
    attn = e * pl.reciprocal(denom, approx=approx_recip)         # (Bt,H,S,S) f32
    attn3 = attn.reshape(Bt * H, S, S)                           # leading merge only
    attn_ref[...] = attn3.astype(attn_ref.dtype)                 # store in natural layout

    ctx = jnp.einsum("bqk,bkd->bqd", attn3.astype(cdt), vh.astype(cdt),
                     preferred_element_type=jnp.float32)         # (Bt*H, S, d_v)
    ctx4 = ctx.reshape(Bt, H, S, d_v)
    context = jnp.concatenate([ctx4[:, h] for h in range(H)], axis=-1)  # (Bt,S,H*dv)
    context = context.reshape(rows, H * d_v)

    # ---- output projection + residual + LayerNorm (fresh LN: w=1, b=0) -------
    attn_out = jnp.dot(context.astype(cdt), wo_ref[...],
                       preferred_element_type=jnp.float32)
    h1 = attn_out + x2d
    mu1 = jnp.mean(h1, axis=-1, keepdims=True)
    c1 = h1 - mu1
    var1 = jnp.mean(c1 * c1, axis=-1, keepdims=True)
    ln1 = c1 * lax.rsqrt(var1 + eps)

    # ---- position-wise FFN (optionally tiled over d_ff) + residual + LN ------
    d_ff = w1_ref.shape[1]
    ln1c = ln1.astype(cdt)                                       # hoisted cast
    if dff_tile is None or dff_tile >= d_ff:
        f = jnp.maximum(jnp.dot(ln1c, w1_ref[...],
                                preferred_element_type=jnp.float32), 0.0)
        f2 = jnp.dot(f.astype(cdt), w2_ref[...],
                     preferred_element_type=jnp.float32)
    else:
        # Static (unrolled) tiles -> static weight slices, bounded relu slab.
        nt = d_ff // dff_tile
        f2 = jnp.zeros((rows, D), jnp.float32)
        for t in range(nt):
            lo, hi = t * dff_tile, (t + 1) * dff_tile
            ft = jnp.maximum(jnp.dot(ln1c, w1_ref[:, lo:hi],
                                     preferred_element_type=jnp.float32), 0.0)
            f2 = f2 + jnp.dot(ft.astype(cdt), w2_ref[lo:hi, :],
                              preferred_element_type=jnp.float32)

    h2 = f2 + ln1
    mu2 = jnp.mean(h2, axis=-1, keepdims=True)
    c2 = h2 - mu2
    var2 = jnp.mean(c2 * c2, axis=-1, keepdims=True)
    ln2 = c2 * lax.rsqrt(var2 + eps)

    out_ref[...] = ln2.astype(out_ref.dtype)                     # (Bt*S, D), no reshape


# ----------------------------------------------------------------------------
# Wrapper
# ----------------------------------------------------------------------------
def _device_kind():
    try:
        return jax.devices()[0].device_kind.lower()
    except Exception:
        return ""


def _default_block_b(B, S, D, H, d_k, d_v, d_ff, dff_tile):
    kind = _device_kind()
    bb = B
    # Two TensorCores per chip (v7x-class): give each a "parallel" grid step.
    if ("v7" in kind or "7x" in kind) and B >= 2 and B % 2 == 0:
        bb = B // 2
    # Keep the per-step f32 activation working set under ~8 MiB on any gen.
    ff = d_ff if dff_tile is None else min(d_ff, dff_tile)

    def act_mib(b):
        rows = b * S
        elems = rows * (3 * D + H * (2 * d_k + d_v) + H * d_v + ff) + 3 * b * H * S * S
        return 4.0 * elems / (1 << 20)

    while bb % 2 == 0 and bb > 1 and act_mib(bb) > 8.0:
        bb //= 2
    return bb


def _vmem_limit_bytes(block_b, S, D, H, d_k, d_v, d_ff, dff_tile, wbytes, abytes):
    kind = _device_kind()
    cap = (56 << 20) if ("v7" in kind or "7x" in kind) else (100 << 20)
    rows = block_b * S
    w_head = 2 * d_k + d_v
    weights = (D * H * w_head + H * d_v * D + 2 * D * d_ff) * wbytes * 2
    io = 2 * (rows * D * 4 + block_b * S * S * 2 + rows * D * 4
              + block_b * H * S * S * abytes)
    ff = d_ff if dff_tile is None else min(d_ff, dff_tile)
    interm = (rows * (3 * D + H * w_head + H * d_v + ff)
              + 3 * block_b * H * S * S) * 4
    need = weights + io + 2 * interm + (4 << 20)
    return int(min(cap, max(need, 16 << 20)))


def encoder_layer(x, attn_mask, params, *, n_heads, d_k, d_v,
                  block_b=None, use_bf16=False, dff_tile=None):
    """x: [B, S, D] f32; attn_mask: [B, S, S] (>0 == masked).
    Returns (enc_outputs [B,S,D] f32, attn [B,H,S,S])."""
    B, S, D = x.shape
    H = n_heads
    d_ff = params["w1"].shape[1]
    w_head = 2 * d_k + d_v
    if dff_tile is not None:
        assert d_ff % dff_tile == 0

    wdt = jnp.bfloat16 if use_bf16 else jnp.float32
    wbytes = 2 if use_bf16 else 4
    attn_dtype = jnp.bfloat16 if use_bf16 else jnp.float32
    abytes = 2 if use_bf16 else 4

    # Head-major fused QKV weight: per head h, columns [Wq_h | Wk_h | Wv_h].
    wq3 = params["wq"].reshape(D, H, d_k)
    wk3 = params["wk"].reshape(D, H, d_k)
    wv3 = params["wv"].reshape(D, H, d_v)
    wqkv = jnp.concatenate([wq3, wk3, wv3], axis=-1).reshape(D, H * w_head).astype(wdt)
    wo = params["wo"].astype(wdt)
    w1 = params["w1"].astype(wdt)
    w2 = params["w2"].astype(wdt)

    if block_b is None:
        block_b = _default_block_b(B, S, D, H, d_k, d_v, d_ff, dff_tile)
    assert B % block_b == 0
    grid_b = B // block_b

    # Lane-friendly flat layouts (free contiguous reshapes on the HBM side).
    x2 = x.reshape(B * S, D).astype(jnp.float32)
    mask2 = attn_mask.astype(jnp.bfloat16)      # 0/1 exact in bf16, half the DMA

    kernel = functools.partial(encoder_layer_kernel, n_heads=H, d_k=d_k, d_v=d_v,
                               dff_tile=dff_tile, approx_recip=use_bf16)

    # Constant index_map -> weight block stays VMEM-resident (no re-DMA per step).
    const = lambda shape: pl.BlockSpec(shape, lambda b: (0,) * len(shape))

    flops = (2 * B * S * D * (H * w_head)            # fused QKV proj
             + 2 * B * H * S * S * (d_k + d_v)       # scores + context
             + 2 * B * S * (H * d_v) * D             # output proj
             + 4 * B * S * D * d_ff)                 # FFN
    transcendentals = B * H * S * S + 2 * B * S
    weights_elems = D * H * w_head + H * d_v * D + 2 * D * d_ff
    bytes_accessed = (B * S * D * 4 + B * S * S * 2 + weights_elems * wbytes
                      + B * S * D * 4 + B * H * S * S * abytes)
    cost = pl.CostEstimate(flops=int(flops),
                           transcendentals=int(transcendentals),
                           bytes_accessed=int(bytes_accessed))

    vmem_limit = _vmem_limit_bytes(block_b, S, D, H, d_k, d_v, d_ff,
                                   dff_tile, wbytes, abytes)

    out2, attn2 = pl.pallas_call(
        kernel,
        out_shape=(
            jax.ShapeDtypeStruct((B * S, D), jnp.float32),       # enc_outputs (flat)
            jax.ShapeDtypeStruct((B * H, S, S), attn_dtype),     # attn (flat over heads)
        ),
        grid_spec=pltpu.PrefetchScalarGridSpec(
            num_scalar_prefetch=0,
            grid=(grid_b,),
            in_specs=[
                pl.BlockSpec((block_b * S, D), lambda b: (b, 0)),      # x (token rows)
                pl.BlockSpec((block_b, S, S), lambda b: (b, 0, 0)),    # mask (bf16)
                const((D, H * w_head)),                                # fused QKV
                const((H * d_v, D)),                                   # W_O
                const((D, d_ff)),                                      # FFN W1
                const((d_ff, D)),                                      # FFN W2
            ],
            out_specs=[
                pl.BlockSpec((block_b * S, D), lambda b: (b, 0)),
                pl.BlockSpec((block_b * H, S, S), lambda b: (b, 0, 0)),
            ],
        ),
        compiler_params=pltpu.CompilerParams(
            dimension_semantics=("parallel",),
            vmem_limit_bytes=vmem_limit),
        cost_estimate=cost,
    )(x2, mask2, wqkv, wo, w1, w2)

    return out2.reshape(B, S, D), attn2.reshape(B, H, S, S)


# ----------------------------------------------------------------------------
# Pure-JAX reference (matches the PyTorch forward semantics)
# ----------------------------------------------------------------------------
def reference_encoder_layer(x, attn_mask, params, *, n_heads, d_k, d_v, eps=1e-5):
    B, S, D = x.shape
    Q = (x @ params["wq"]).reshape(B, S, n_heads, d_k).transpose(0, 2, 1, 3)
    K = (x @ params["wk"]).reshape(B, S, n_heads, d_k).transpose(0, 2, 1, 3)
    V = (x @ params["wv"]).reshape(B, S, n_heads, d_v).transpose(0, 2, 1, 3)
    scores = jnp.einsum("bhqd,bhkd->bhqk", Q, K) / math.sqrt(d_k)
    scores = jnp.where(attn_mask[:, None, :, :] > 0, -1000000000.0, scores)
    attn = jax.nn.softmax(scores, axis=-1)
    ctx = jnp.einsum("bhqk,bhkd->bhqd", attn, V)
    ctx = ctx.transpose(0, 2, 1, 3).reshape(B, S, n_heads * d_v)
    out = ctx @ params["wo"] + x
    mu = out.mean(-1, keepdims=True)
    ln1 = (out - mu) / jnp.sqrt(((out - mu) ** 2).mean(-1, keepdims=True) + eps)
    f = jnp.maximum(ln1 @ params["w1"], 0.0) @ params["w2"] + ln1
    mu2 = f.mean(-1, keepdims=True)
    ln2 = (f - mu2) / jnp.sqrt(((f - mu2) ** 2).mean(-1, keepdims=True) + eps)
    return ln2, attn


if __name__ == "__main__":
    B, S, D = 2, 8, 32
    n_heads, d_k, d_v, d_ff = 4, 8, 8, 64

    key = jax.random.PRNGKey(0)
    ks = jax.random.split(key, 8)
    init = lambda k, shape: (jax.random.normal(k, shape, jnp.float32) * 0.05)
    params = {
        "wq": init(ks[0], (D, n_heads * d_k)),
        "wk": init(ks[1], (D, n_heads * d_k)),
        "wv": init(ks[2], (D, n_heads * d_v)),
        "wo": init(ks[3], (n_heads * d_v, D)),
        "w1": init(ks[4], (D, d_ff)),
        "w2": init(ks[5], (d_ff, D)),
    }
    x = jax.random.normal(ks[6], (B, S, D), jnp.float32)
    # boolean pad mask (True == masked), passed as float 0/1 like the module's caller
    mask = (jax.random.uniform(ks[7], (B, S, S)) > 0.85).astype(jnp.float32)

    ref_out, ref_attn = reference_encoder_layer(
        x, mask, params, n_heads=n_heads, d_k=d_k, d_v=d_v)

    # f32-exact path (parity with the PyTorch reference).
    out, attn = encoder_layer(x, mask, params, n_heads=n_heads, d_k=d_k, d_v=d_v)
    out, attn = jax.block_until_ready((out, attn))
    assert jnp.allclose(out, ref_out, atol=1e-4, rtol=1e-4)
    assert jnp.allclose(attn, ref_attn, atol=1e-5, rtol=1e-5)

    # Performance path: bf16 MXU operands, approx reciprocal, tiled FFN.
    out16, attn16 = encoder_layer(x, mask, params, n_heads=n_heads, d_k=d_k,
                                  d_v=d_v, use_bf16=True, dff_tile=32)
    out16, attn16 = jax.block_until_ready((out16, attn16))
    assert jnp.allclose(out16, ref_out, atol=5e-2, rtol=5e-2)
    assert jnp.allclose(attn16.astype(jnp.float32), ref_attn, atol=5e-2, rtol=5e-2)

    print("KERNEL_OK")
</pallas_src>

<mosaic_0001>
module attributes {stable_mosaic.version = 11 : i64} {
  func.func @encoder_layer_kernel(%arg0: i32, %arg1: memref<16x32xf32, #tpu.memory_space<vmem>>, %arg2: memref<2x8x8xbf16, #tpu.memory_space<vmem>>, %arg3: memref<32x96xf32, #tpu.memory_space<vmem>>, %arg4: memref<32x32xf32, #tpu.memory_space<vmem>>, %arg5: memref<32x64xf32, #tpu.memory_space<vmem>>, %arg6: memref<64x32xf32, #tpu.memory_space<vmem>>, %arg7: memref<16x32xf32, #tpu.memory_space<vmem>>, %arg8: memref<8x8x8xf32, #tpu.memory_space<vmem>>) attributes {dimension_semantics = [#tpu.dimension_semantics<parallel>], iteration_bounds = array<i64: 1>, scalar_prefetch = 0 : i64, scratch_operands = 0 : i64, tpu.core_type = #tpu.core_type<tc>, window_params = [{transform_indices = @transform_0, window_bounds = array<i64: 16, 32>}, {transform_indices = @transform_1, window_bounds = array<i64: 2, 8, 8>}, {pipeline_mode = #tpu.pipeline_mode<synchronous>, transform_indices = @transform_2, window_bounds = array<i64: 32, 96>}, {pipeline_mode = #tpu.pipeline_mode<synchronous>, transform_indices = @transform_3, window_bounds = array<i64: 32, 32>}, {pipeline_mode = #tpu.pipeline_mode<synchronous>, transform_indices = @transform_4, window_bounds = array<i64: 32, 64>}, {pipeline_mode = #tpu.pipeline_mode<synchronous>, transform_indices = @transform_5, window_bounds = array<i64: 64, 32>}, {transform_indices = @transform_6, window_bounds = array<i64: 16, 32>}, {transform_indices = @transform_7, window_bounds = array<i64: 8, 8, 8>}]} {
    %c0 = arith.constant 0 : index
    %c0_0 = arith.constant 0 : index
    %0 = vector.load %arg1[%c0, %c0_0] : memref<16x32xf32, #tpu.memory_space<vmem>>, vector<16x32xf32>
    %c0_1 = arith.constant 0 : index
    %c0_2 = arith.constant 0 : index
    %1 = vector.load %arg3[%c0_1, %c0_2] : memref<32x96xf32, #tpu.memory_space<vmem>>, vector<32x96xf32>
    %cst = arith.constant dense<0.000000e+00> : vector<16x96xf32>
    %2 = tpu.matmul %0, %1, %cst {dimension_numbers = #tpu.dot_dimension_numbers<[1], [0], [0], [1], [0, 0, 1, 1], [], []>} : vector<16x32xf32>, vector<32x96xf32>, vector<16x96xf32> -> vector<16x96xf32>
    %3 = vector.extract_strided_slice %2 {offsets = [0, 0], sizes = [16, 24], strides = [1, 1]} : vector<16x96xf32> to vector<16x24xf32>
    %4 = vector.shape_cast %3 : vector<16x24xf32> to vector<2x8x24xf32>
    %5 = vector.extract_strided_slice %2 {offsets = [0, 24], sizes = [16, 24], strides = [1, 1]} : vector<16x96xf32> to vector<16x24xf32>
    %6 = vector.shape_cast %5 : vector<16x24xf32> to vector<2x8x24xf32>
    %7 = vector.extract_strided_slice %2 {offsets = [0, 48], sizes = [16, 24], strides = [1, 1]} : vector<16x96xf32> to vector<16x24xf32>
    %8 = vector.shape_cast %7 : vector<16x24xf32> to vector<2x8x24xf32>
    %9 = vector.extract_strided_slice %2 {offsets = [0, 72], sizes = [16, 24], strides = [1, 1]} : vector<16x96xf32> to vector<16x24xf32>
    %10 = vector.shape_cast %9 : vector<16x24xf32> to vector<2x8x24xf32>
    %11 = vector.shape_cast %4 : vector<2x8x24xf32> to vector<2x1x8x24xf32>
    %12 = vector.shape_cast %6 : vector<2x8x24xf32> to vector<2x1x8x24xf32>
    %13 = vector.shape_cast %8 : vector<2x8x24xf32> to vector<2x1x8x24xf32>
    %14 = vector.shape_cast %10 : vector<2x8x24xf32> to vector<2x1x8x24xf32>
    %15 = tpu.concatenate %11, %12, %13, %14 in 1 : vector<2x1x8x24xf32>, vector<2x1x8x24xf32>, vector<2x1x8x24xf32>, vector<2x1x8x24xf32> -> vector<2x4x8x24xf32>
    %16 = vector.shape_cast %15 : vector<2x4x8x24xf32> to vector<8x8x24xf32>
    %17 = vector.extract_strided_slice %16 {offsets = [0, 0, 0], sizes = [8, 8, 8], strides = [1, 1, 1]} : vector<8x8x24xf32> to vector<8x8x8xf32>
    %18 = vector.extract_strided_slice %16 {offsets = [0, 0, 8], sizes = [8, 8, 8], strides = [1, 1, 1]} : vector<8x8x24xf32> to vector<8x8x8xf32>
    %19 = vector.extract_strided_slice %16 {offsets = [0, 0, 16], sizes = [8, 8, 8], strides = [1, 1, 1]} : vector<8x8x24xf32> to vector<8x8x8xf32>
    "tpu.trace_start"() <{level = 10 : i32, message = "bqd,bkd->bqk"}> : () -> ()
    %cst_3 = arith.constant dense<0.000000e+00> : vector<8x8x8xf32>
    %20 = tpu.matmul %17, %18, %cst_3 {dimension_numbers = #tpu.dot_dimension_numbers<[2], [2], [1], [1], [0, 0, 0, 1, 1, 1], [0], [0]>} : vector<8x8x8xf32>, vector<8x8x8xf32>, vector<8x8x8xf32> -> vector<8x8x8xf32>
    "tpu.trace_stop"() : () -> ()
    %cst_4 = arith.constant 0.353553385 : f32
    %21 = vector.broadcast %cst_4 : f32 to vector<8x8x8xf32>
    %22 = arith.mulf %20, %21 : vector<8x8x8xf32>
    %23 = vector.shape_cast %22 : vector<8x8x8xf32> to vector<2x4x8x8xf32>
    %c0_5 = arith.constant 0 : index
    %c0_6 = arith.constant 0 : index
    %c0_7 = arith.constant 0 : index
    %24 = vector.load %arg2[%c0_5, %c0_6, %c0_7] : memref<2x8x8xbf16, #tpu.memory_space<vmem>>, vector<2x8x8xbf16>
    %cst_8 = arith.constant 0.000000e+00 : bf16
    %25 = vector.broadcast %cst_8 : bf16 to vector<2x8x8xbf16>
    %26 = arith.cmpf ogt, %24, %25 : vector<2x8x8xbf16>
    %27 = vector.shape_cast %26 : vector<2x8x8xi1> to vector<2x1x8x8xi1>
    %cst_9 = arith.constant -1.000000e+09 : f32
    %28 = vector.shape_cast %27 : vector<2x1x8x8xi1> to vector<2x1x8x8xi1>
    %29 = vector.broadcast %28 : vector<2x1x8x8xi1> to vector<2x4x8x8xi1>
    %30 = vector.broadcast %cst_9 : f32 to vector<2x4x8x8xf32>
    %31 = arith.select %29, %30, %23 : vector<2x4x8x8xi1>, vector<2x4x8x8xf32>
    %cst_10 = arith.constant dense<0xFF800000> : vector<2x4x8xf32>
    %32 = vector.multi_reduction <maximumf>, %31, %cst_10 [3] : vector<2x4x8x8xf32> to vector<2x4x8xf32>
    %33 = vector.shape_cast %32 : vector<2x4x8xf32> to vector<2x4x8x1xf32>
    %34 = vector.broadcast %33 : vector<2x4x8x1xf32> to vector<2x4x8x8xf32>
    %35 = arith.subf %31, %34 : vector<2x4x8x8xf32>
    %36 = math.exp %35 : vector<2x4x8x8xf32>
    %cst_11 = arith.constant dense<0.000000e+00> : vector<2x4x8xf32>
    %37 = vector.multi_reduction <add>, %36, %cst_11 [3] : vector<2x4x8x8xf32> to vector<2x4x8xf32>
    %38 = vector.shape_cast %37 : vector<2x4x8xf32> to vector<2x4x8x1xf32>
    %39 = tpu.reciprocal %38 : vector<2x4x8x1xf32> -> vector<2x4x8x1xf32>
    %40 = vector.broadcast %39 : vector<2x4x8x1xf32> to vector<2x4x8x8xf32>
    %41 = arith.mulf %36, %40 : vector<2x4x8x8xf32>
    %42 = vector.shape_cast %41 : vector<2x4x8x8xf32> to vector<8x8x8xf32>
    %c0_12 = arith.constant 0 : index
    %c0_13 = arith.constant 0 : index
    %c0_14 = arith.constant 0 : index
    %43 = vector.load %arg8[%c0_12, %c0_13, %c0_14] : memref<8x8x8xf32, #tpu.memory_space<vmem>>, vector<8x8x8xf32>
    tpu.vector_store %arg8[%c0_12, %c0_13, %c0_14], %42 {strides = array<i32>} : memref<8x8x8xf32, #tpu.memory_space<vmem>>, vector<8x8x8xf32>,
    "tpu.trace_start"() <{level = 10 : i32, message = "bqk,bkd->bqd"}> : () -> ()
    %cst_15 = arith.constant dense<0.000000e+00> : vector<8x8x8xf32>
    %44 = tpu.matmul %42, %19, %cst_15 {dimension_numbers = #tpu.dot_dimension_numbers<[2], [1], [1], [2], [0, 0, 0, 1, 1, 2], [0], [0]>} : vector<8x8x8xf32>, vector<8x8x8xf32>, vector<8x8x8xf32> -> vector<8x8x8xf32>
    "tpu.trace_stop"() : () -> ()
    %45 = vector.shape_cast %44 : vector<8x8x8xf32> to vector<2x4x8x8xf32>
    %46 = vector.extract_strided_slice %45 {offsets = [0, 0, 0, 0], sizes = [2, 1, 8, 8], strides = [1, 1, 1, 1]} : vector<2x4x8x8xf32> to vector<2x1x8x8xf32>
    %47 = vector.shape_cast %46 : vector<2x1x8x8xf32> to vector<2x8x8xf32>
    %48 = vector.extract_strided_slice %45 {offsets = [0, 1, 0, 0], sizes = [2, 1, 8, 8], strides = [1, 1, 1, 1]} : vector<2x4x8x8xf32> to vector<2x1x8x8xf32>
    %49 = vector.shape_cast %48 : vector<2x1x8x8xf32> to vector<2x8x8xf32>
    %50 = vector.extract_strided_slice %45 {offsets = [0, 2, 0, 0], sizes = [2, 1, 8, 8], strides = [1, 1, 1, 1]} : vector<2x4x8x8xf32> to vector<2x1x8x8xf32>
    %51 = vector.shape_cast %50 : vector<2x1x8x8xf32> to vector<2x8x8xf32>
    %52 = vector.extract_strided_slice %45 {offsets = [0, 3, 0, 0], sizes = [2, 1, 8, 8], strides = [1, 1, 1, 1]} : vector<2x4x8x8xf32> to vector<2x1x8x8xf32>
    %53 = vector.shape_cast %52 : vector<2x1x8x8xf32> to vector<2x8x8xf32>
    %54 = tpu.concatenate %47, %49, %51, %53 in 2 : vector<2x8x8xf32>, vector<2x8x8xf32>, vector<2x8x8xf32>, vector<2x8x8xf32> -> vector<2x8x32xf32>
    %55 = vector.shape_cast %54 : vector<2x8x32xf32> to vector<16x32xf32>
    %c0_16 = arith.constant 0 : index
    %c0_17 = arith.constant 0 : index
    %56 = vector.load %arg4[%c0_16, %c0_17] : memref<32x32xf32, #tpu.memory_space<vmem>>, vector<32x32xf32>
    %cst_18 = arith.constant dense<0.000000e+00> : vector<16x32xf32>
    %57 = tpu.matmul %55, %56, %cst_18 {dimension_numbers = #tpu.dot_dimension_numbers<[1], [0], [0], [1], [0, 0, 1, 1], [], []>} : vector<16x32xf32>, vector<32x32xf32>, vector<16x32xf32> -> vector<16x32xf32>
    %58 = arith.addf %57, %0 : vector<16x32xf32>
    %cst_19 = arith.constant dense<0.000000e+00> : vector<16xf32>
    %59 = vector.multi_reduction <add>, %58, %cst_19 [1] : vector<16x32xf32> to vector<16xf32>
    %60 = vector.shape_cast %59 : vector<16xf32> to vector<16x1xf32>
    %cst_20 = arith.constant 3.200000e+01 : f32
    %61 = vector.broadcast %cst_20 : f32 to vector<16x1xf32>
    %62 = arith.divf %60, %61 : vector<16x1xf32>
    %63 = vector.broadcast %62 : vector<16x1xf32> to vector<16x32xf32>
    %64 = arith.subf %58, %63 : vector<16x32xf32>
    %65 = arith.mulf %64, %64 : vector<16x32xf32>
    %cst_21 = arith.constant dense<0.000000e+00> : vector<16xf32>
    %66 = vector.multi_reduction <add>, %65, %cst_21 [1] : vector<16x32xf32> to vector<16xf32>
    %67 = vector.shape_cast %66 : vector<16xf32> to vector<16x1xf32>
    %cst_22 = arith.constant 3.200000e+01 : f32
    %68 = vector.broadcast %cst_22 : f32 to vector<16x1xf32>
    %69 = arith.divf %67, %68 : vector<16x1xf32>
    %cst_23 = arith.constant 9.99999974E-6 : f32
    %70 = vector.broadcast %cst_23 : f32 to vector<16x1xf32>
    %71 = arith.addf %69, %70 : vector<16x1xf32>
    %72 = math.rsqrt %71 : vector<16x1xf32>
    %73 = vector.broadcast %72 : vector<16x1xf32> to vector<16x32xf32>
    %74 = arith.mulf %64, %73 : vector<16x32xf32>
    %c0_24 = arith.constant 0 : index
    %c0_25 = arith.constant 0 : index
    %75 = vector.load %arg5[%c0_24, %c0_25] : memref<32x64xf32, #tpu.memory_space<vmem>>, vector<32x64xf32>
    %cst_26 = arith.constant dense<0.000000e+00> : vector<16x64xf32>
    %76 = tpu.matmul %74, %75, %cst_26 {dimension_numbers = #tpu.dot_dimension_numbers<[1], [0], [0], [1], [0, 0, 1, 1], [], []>} : vector<16x32xf32>, vector<32x64xf32>, vector<16x64xf32> -> vector<16x64xf32>
    %cst_27 = arith.constant 0.000000e+00 : f32
    %77 = vector.broadcast %cst_27 : f32 to vector<16x64xf32>
    %78 = arith.maximumf %76, %77 : vector<16x64xf32>
    %c0_28 = arith.constant 0 : index
    %c0_29 = arith.constant 0 : index
    %79 = vector.load %arg6[%c0_28, %c0_29] : memref<64x32xf32, #tpu.memory_space<vmem>>, vector<64x32xf32>
    %cst_30 = arith.constant dense<0.000000e+00> : vector<16x32xf32>
    %80 = tpu.matmul %78, %79, %cst_30 {dimension_numbers = #tpu.dot_dimension_numbers<[1], [0], [0], [1], [0, 0, 1, 1], [], []>} : vector<16x64xf32>, vector<64x32xf32>, vector<16x32xf32> -> vector<16x32xf32>
    %81 = arith.addf %80, %74 : vector<16x32xf32>
    %cst_31 = arith.constant dense<0.000000e+00> : vector<16xf32>
    %82 = vector.multi_reduction <add>, %81, %cst_31 [1] : vector<16x32xf32> to vector<16xf32>
    %83 = vector.shape_cast %82 : vector<16xf32> to vector<16x1xf32>
    %cst_32 = arith.constant 3.200000e+01 : f32
    %84 = vector.broadcast %cst_32 : f32 to vector<16x1xf32>
    %85 = arith.divf %83, %84 : vector<16x1xf32>
    %86 = vector.broadcast %85 : vector<16x1xf32> to vector<16x32xf32>
    %87 = arith.subf %81, %86 : vector<16x32xf32>
    %88 = arith.mulf %87, %87 : vector<16x32xf32>
    %cst_33 = arith.constant dense<0.000000e+00> : vector<16xf32>
    %89 = vector.multi_reduction <add>, %88, %cst_33 [1] : vector<16x32xf32> to vector<16xf32>
    %90 = vector.shape_cast %89 : vector<16xf32> to vector<16x1xf32>
    %cst_34 = arith.constant 3.200000e+01 : f32
    %91 = vector.broadcast %cst_34 : f32 to vector<16x1xf32>
    %92 = arith.divf %90, %91 : vector<16x1xf32>
    %cst_35 = arith.constant 9.99999974E-6 : f32
    %93 = vector.broadcast %cst_35 : f32 to vector<16x1xf32>
    %94 = arith.addf %92, %93 : vector<16x1xf32>
    %95 = math.rsqrt %94 : vector<16x1xf32>
    %96 = vector.broadcast %95 : vector<16x1xf32> to vector<16x32xf32>
    %97 = arith.mulf %87, %96 : vector<16x32xf32>
    %c0_36 = arith.constant 0 : index
    %c0_37 = arith.constant 0 : index
    %98 = vector.load %arg7[%c0_36, %c0_37] : memref<16x32xf32, #tpu.memory_space<vmem>>, vector<16x32xf32>
    tpu.vector_store %arg7[%c0_36, %c0_37], %97 {strides = array<i32>} : memref<16x32xf32, #tpu.memory_space<vmem>>, vector<16x32xf32>,
    return
  }
  func.func @transform_0(%arg0: i32) -> (i32, i32) {
    %c0_i32 = arith.constant 0 : i32
    %c0_i32_0 = arith.constant 0 : i32
    return %arg0, %c0_i32 : i32, i32
  }
  func.func @transform_1(%arg0: i32) -> (i32, i32, i32) {
    %c0_i32 = arith.constant 0 : i32
    %c0_i32_0 = arith.constant 0 : i32
    %c0_i32_1 = arith.constant 0 : i32
    return %arg0, %c0_i32, %c0_i32_0 : i32, i32, i32
  }
  func.func @transform_2(%arg0: i32) -> (i32, i32) {
    %c0_i32 = arith.constant 0 : i32
    %c0_i32_0 = arith.constant 0 : i32
    %c0_i32_1 = arith.constant 0 : i32
    return %c0_i32, %c0_i32_0 : i32, i32
  }
  func.func @transform_3(%arg0: i32) -> (i32, i32) {
    %c0_i32 = arith.constant 0 : i32
    %c0_i32_0 = arith.constant 0 : i32
    %c0_i32_1 = arith.constant 0 : i32
    return %c0_i32, %c0_i32_0 : i32, i32
  }
  func.func @transform_4(%arg0: i32) -> (i32, i32) {
    %c0_i32 = arith.constant 0 : i32
    %c0_i32_0 = arith.constant 0 : i32
    %c0_i32_1 = arith.constant 0 : i32
    return %c0_i32, %c0_i32_0 : i32, i32
  }
  func.func @transform_5(%arg0: i32) -> (i32, i32) {
    %c0_i32 = arith.constant 0 : i32
    %c0_i32_0 = arith.constant 0 : i32
    %c0_i32_1 = arith.constant 0 : i32
    return %c0_i32, %c0_i32_0 : i32, i32
  }
  func.func @transform_6(%arg0: i32) -> (i32, i32) {
    %c0_i32 = arith.constant 0 : i32
    %c0_i32_0 = arith.constant 0 : i32
    return %arg0, %c0_i32 : i32, i32
  }
  func.func @transform_7(%arg0: i32) -> (i32, i32, i32) {
    %c0_i32 = arith.constant 0 : i32
    %c0_i32_0 = arith.constant 0 : i32
    %c0_i32_1 = arith.constant 0 : i32
    return %arg0, %c0_i32, %c0_i32_0 : i32, i32, i32
  }
}

</mosaic_0001>

<llo_original>
// kernel: tpu_custom_call.1
$region0: #{tpu_custom_call.1}
  #allocation0 [shape = 'u32[]', space=smem, size = 0x4, offset = 0x4, fixed_abs, tag = 'smem constant byte address 0x4 - core index']
  #allocation1 [shape = 'u32[72,128]{1,0:T(1,128)}', space=vmem, size = 0x9000, scoped, tag = 'internal scratch']
  %s0 = inlined_call_operand.hbm [shape: f32[16,32], index: 0, kind: input, shape index: {}]
  %s1 = inlined_call_operand.hbm [shape: bf16[2,8,8], index: 1, kind: input, shape index: {}]
  %s2 = inlined_call_operand.vmem [shape: f32[32,96], index: 2, kind: input, shape index: {}]
  %s3 = inlined_call_operand.vmem [shape: f32[32,32], index: 3, kind: input, shape index: {}]
  %s4 = inlined_call_operand.vmem [shape: f32[32,64], index: 4, kind: input, shape index: {}]
  %s5 = inlined_call_operand.vmem [shape: f32[64,32], index: 5, kind: input, shape index: {}]
  %s6 = inlined_call_operand.hbm [shape: f32[16,32], index: 6, kind: output, shape index: {0}]
  %s7 = inlined_call_operand.hbm [shape: f32[8,8,8], index: 7, kind: output, shape index: {1}]
  %8 = xla_tuple %s6, %s7
  %s9 = sld [smem:[#allocation0]]
  $region50: #{tpu_custom_call.1} parent=0
    _
  %s11 = ssub.s32 1, %s9
  %s12 = scalar_select 0, %s11, %s9
  $region1: #{tpu_custom_call.1} parent=0
    #allocation2 [shape = 'u8[8192]{0}', space=vmem, size = 0x2000, scoped, tag = 'input window, operand 0, single buffered']
    #allocation3 [shape = 's32[1]{0}', space=sflag, size = 0x4, scoped, tag = 'scoped memory for tpu_custom_call.1']
    #allocation4 [shape = 's32[1]{0}', space=sflag, size = 0x4, scoped, tag = 'scoped memory for tpu_custom_call.1']
    #allocation5 [shape = 'u8[4096]{0}', space=vmem, size = 0x1000, scoped, tag = 'input window, operand 1, single buffered']
    #allocation6 [shape = 's32[1]{0}', space=sflag, size = 0x4, scoped, tag = 'scoped memory for tpu_custom_call.1']
    #allocation7 [shape = 'u8[8192]{0}', space=vmem, size = 0x2000, scoped, tag = 'output window, operand 0, single buffered']
    #allocation8 [shape = 'u8[32768]{0}', space=vmem, size = 0x8000, scoped, tag = 'output window, operand 1, single buffered']
    #allocation9 [shape = 's32[1]{0}', space=sflag, size = 0x4, scoped, tag = 'scoped memory for tpu_custom_call.1']
    %13 = vsyncpa [#allocation3], 0
    %14 = vsyncpa [#allocation6], 0
    %15 = vsyncpa [#allocation4], 0
    %16 = vsyncpa [#allocation9], 0
    // Predicated region
    $region2: #{tpu_custom_call.1} parent=1 // pred_check
      _
    $region3: #{tpu_custom_call.1} parent=1 // pred_check_branch
      %18 = sbr.rel (0) target = $region5
    $region4: #{tpu_custom_call.1} parent=1 // pred_region
      %20 = vsyncadd [#allocation3], 0
      %s21 = sshll.u32 %s0, 4
      %s22 = int_to_ptr.hbm [resolvable:$true] %s21
      %s23 = sshll.u32 [#allocation2], 4
      %s24 = int_to_ptr.vmem [resolvable:$true] %s23
      %29 = dma.hbm_to_vmem [thread:$0]  %s22, 256, %s24, [#allocation3], 128, 128, 8
    $region5: #{tpu_custom_call.1} parent=1 // pred_fallthru
      _
    // Predicated region
    $region6: #{tpu_custom_call.1} parent=1 // pred_check
      _
    $region7: #{tpu_custom_call.1} parent=1 // pred_check_branch
      %31 = sbr.rel (0) target = $region9
    $region8: #{tpu_custom_call.1} parent=1 // pred_region
      %33 = vsyncadd [#allocation6], 0
      %s34 = sshll.u32 %s1, 4
      %s35 = int_to_ptr.hbm [resolvable:$true] %s34
      %s36 = sshll.u32 [#allocation5], 4
      %s37 = int_to_ptr.vmem [resolvable:$true] %s36
      %42 = dma.hbm_to_vmem [thread:$0]  %s35, 128, %s37, [#allocation6], 64, 64, 4
    $region9: #{tpu_custom_call.1} parent=1 // pred_fallthru
      _
    // Predicated region
    $region10: #{tpu_custom_call.1} parent=1 // pred_check
      _
    $region11: #{tpu_custom_call.1} parent=1 // pred_check_branch
      %44 = sbr.rel (0) target = $region13
    $region12: #{tpu_custom_call.1} parent=1 // pred_region
      _
    $region13: #{tpu_custom_call.1} parent=1 // pred_fallthru
      _
    // Predicated region
    $region14: #{tpu_custom_call.1} parent=1 // pred_check
      _
    $region15: #{tpu_custom_call.1} parent=1 // pred_check_branch
      %46 = sbr.rel (0) target = $region17
    $region16: #{tpu_custom_call.1} parent=1 // pred_region
      _
    $region17: #{tpu_custom_call.1} parent=1 // pred_fallthru
      _
    // Predicated region
    $region18: #{tpu_custom_call.1} parent=1 // pred_check
      _
    $region19: #{tpu_custom_call.1} parent=1 // pred_check_branch
      %48 = sbr.rel (0) target = $region21
    $region20: #{tpu_custom_call.1} parent=1 // pred_region
      _
    $region21: #{tpu_custom_call.1} parent=1 // pred_fallthru
      _
    // Predicated region
    $region22: #{tpu_custom_call.1} parent=1 // pred_check
      _
    $region23: #{tpu_custom_call.1} parent=1 // pred_check_branch
      %50 = sbr.rel (0) target = $region25
    $region24: #{tpu_custom_call.1} parent=1 // pred_region
      _
    $region25: #{tpu_custom_call.1} parent=1 // pred_fallthru
      _
    // Predicated region
    $region26: #{tpu_custom_call.1} parent=1 // pred_check
      _
    $region27: #{tpu_custom_call.1} parent=1 // pred_check_branch
      %52 = sbr.rel (0) target = $region29
    $region28: #{tpu_custom_call.1} parent=1 // pred_region
      %54 = dma.done [#allocation3], 256
    $region29: #{tpu_custom_call.1} parent=1 // pred_fallthru
      _
    // Predicated region
    $region30: #{tpu_custom_call.1} parent=1 // pred_check
      _
    $region31: #{tpu_custom_call.1} parent=1 // pred_check_branch
      %56 = sbr.rel (0) target = $region33
    $region32: #{tpu_custom_call.1} parent=1 // pred_region
      %58 = dma.done [#allocation6], 128
    $region33: #{tpu_custom_call.1} parent=1 // pred_fallthru
      _
    %v59 = vld [vmem:[#allocation2] sm:$0xff]
    %v60 = vld [vmem:[#allocation2 + $0x8] sm:$0xff]
    %v61 = vld [vmem:[%s2] sm:$0xff]
    %v62 = vld [vmem:[%s2 + $0x8] sm:$0xff]
    %v63 = vld [vmem:[%s2 + $0x10] sm:$0xff]
    %v64 = vld [vmem:[%s2 + $0x18] sm:$0xff]
    %vm65 = vcmask 261120
    %v67 = vsel %vm65, %v59, 0
    %v70 = vsel %vm65, %v60, 0
    %72 = vmatpush.msra.mxu0 0.0
    %73 = vmatpush.msra.mxu0 0.0
    %74 = vmatpush.msra.mxu0 0.0
    %75 = vmatpush.msra.mxu0 0.0
    %76 = vmatpush.msra.mxu0 0.0
    %77 = vmatpush.msra.mxu0 0.0
    %78 = vmatpush.msra.mxu0 0.0
    %79 = vmatpush.msra.mxu0 0.0
    %80 = vmatpush.msra.mxu0 0.0
    %81 = vmatpush.msra.mxu0 0.0
    %82 = vmatpush.msra.mxu0 0.0
    %83 = vmatpush.msra.mxu0 0.0
    %84 = vmatpush.msra.mxu0 %v64
    %85 = vmatpush.msra.mxu0 %v63
    %86 = vmatpush.msra.mxu0 %v62
    %87 = vmatpush.msra.mxu0 %v61
    %88 = vmatmul.f32.gmra.mxu0 %v67
    %v89 = vpop.f32.mrf.mxu0
    %v90 = vadd.f32 0.0, %v89
    %91 = vmatmul.f32.gmra.mxu0 %v70
    %v92 = vpop.f32.mrf.mxu0
    %v93 = vadd.f32 0.0, %v92
    %94 = vdwg.mxu0
    %97 = vrot.lane.b32.xlu0 %v90, 104
    %v98 = vpop.permute.xlu0 %97
    %99 = vrot.lane.b32.xlu0 %v93, 104
    %v100 = vpop.permute.xlu0 %99
    %101 = vrot.lane.b32.xlu0 %v90, 80
    %v102 = vpop.permute.xlu0 %101
    %103 = vrot.lane.b32.xlu0 %v93, 80
    %v104 = vpop.permute.xlu0 %103
    %105 = vrot.lane.b32.xlu0 %v90, 56
    %v106 = vpop.permute.xlu0 %105
    %107 = vrot.lane.b32.xlu0 %v93, 56
    %v108 = vpop.permute.xlu0 %107
    %109 = vrot.lane.b32.xlu0 %v90, 120
    %v110 = vpop.permute.xlu0 %109
    %vm111 = vcmask 64512
    %v112 = vsel %vm111, %v90, 0
    %v114 = vsel %vm111, %v110, 0
    %116 = vmatpush.xpose.msra.mxu0 0.0
    %117 = vmatpush.xpose.msra.mxu0 0.0
    %118 = vmatpush.xpose.msra.mxu0 0.0
    %119 = vmatpush.xpose.msra.mxu0 0.0
    %120 = vmatpush.xpose.msra.mxu0 0.0
    %121 = vmatpush.xpose.msra.mxu0 0.0
    %122 = vmatpush.xpose.msra.mxu0 0.0
    %123 = vmatpush.xpose.msra.mxu0 0.0
    %124 = vmatpush.xpose.msra.mxu0 0.0
    %125 = vmatpush.xpose.msra.mxu0 0.0
    %126 = vmatpush.xpose.msra.mxu0 0.0
    %127 = vmatpush.xpose.msra.mxu0 0.0
    %128 = vmatpush.xpose.msra.mxu0 0.0
    %129 = vmatpush.xpose.msra.mxu0 0.0
    %130 = vmatpush.xpose.msra.mxu0 0.0
    %131 = vmatpush.xpose.msra.mxu0 %v114
    %132 = vmatmul.f32.gmra.mxu0 %v112
    %v133 = vpop.f32.mrf.mxu0
    %v134 = vadd.f32 0.0, %v133
    %135 = vdwg.mxu0
    %136 = vrot.lane.b32.xlu0 %v98, 120
    %v137 = vpop.permute.xlu0 %136
    %v138 = vsel %vm111, %v98, 0
    %v140 = vsel %vm111, %v137, 0
    %142 = vmatpush.xpose.msra.mxu0 0.0
    %143 = vmatpush.xpose.msra.mxu0 0.0
    %144 = vmatpush.xpose.msra.mxu0 0.0
    %145 = vmatpush.xpose.msra.mxu0 0.0
    %146 = vmatpush.xpose.msra.mxu0 0.0
    %147 = vmatpush.xpose.msra.mxu0 0.0
    %148 = vmatpush.xpose.msra.mxu0 0.0
    %149 = vmatpush.xpose.msra.mxu0 0.0
    %150 = vmatpush.xpose.msra.mxu0 0.0
    %151 = vmatpush.xpose.msra.mxu0 0.0
    %152 = vmatpush.xpose.msra.mxu0 0.0
    %153 = vmatpush.xpose.msra.mxu0 0.0
    %154 = vmatpush.xpose.msra.mxu0 0.0
    %155 = vmatpush.xpose.msra.mxu0 0.0
    %156 = vmatpush.xpose.msra.mxu0 0.0
    %157 = vmatpush.xpose.msra.mxu0 %v140
    %158 = vmatmul.f32.gmra.mxu0 %v138
    %v159 = vpop.f32.mrf.mxu0
    %v160 = vadd.f32 0.0, %v159
    %161 = vdwg.mxu0
    %162 = vrot.lane.b32.xlu0 %v102, 120
    %v163 = vpop.permute.xlu0 %162
    %v164 = vsel %vm111, %v102, 0
    %v166 = vsel %vm111, %v163, 0
    %168 = vmatpush.xpose.msra.mxu0 0.0
    %169 = vmatpush.xpose.msra.mxu0 0.0
    %170 = vmatpush.xpose.msra.mxu0 0.0
    %171 = vmatpush.xpose.msra.mxu0 0.0
    %172 = vmatpush.xpose.msra.mxu0 0.0
    %173 = vmatpush.xpose.msra.mxu0 0.0
    %174 = vmatpush.xpose.msra.mxu0 0.0
    %175 = vmatpush.xpose.msra.mxu0 0.0
    %176 = vmatpush.xpose.msra.mxu0 0.0
    %177 = vmatpush.xpose.msra.mxu0 0.0
    %178 = vmatpush.xpose.msra.mxu0 0.0
    %179 = vmatpush.xpose.msra.mxu0 0.0
    %180 = vmatpush.xpose.msra.mxu0 0.0
    %181 = vmatpush.xpose.msra.mxu0 0.0
    %182 = vmatpush.xpose.msra.mxu0 0.0
    %183 = vmatpush.xpose.msra.mxu0 %v166
    %184 = vmatmul.f32.gmra.mxu0 %v164
    %v185 = vpop.f32.mrf.mxu0
    %v186 = vadd.f32 0.0, %v185
    %187 = vdwg.mxu0
    %188 = vrot.lane.b32.xlu0 %v106, 120
    %v189 = vpop.permute.xlu0 %188
    %v190 = vsel %vm111, %v106, 0
    %v192 = vsel %vm111, %v189, 0
    %194 = vmatpush.xpose.msra.mxu0 0.0
    %195 = vmatpush.xpose.msra.mxu0 0.0
    %196 = vmatpush.xpose.msra.mxu0 0.0
    %197 = vmatpush.xpose.msra.mxu0 0.0
    %198 = vmatpush.xpose.msra.mxu0 0.0
    %199 = vmatpush.xpose.msra.mxu0 0.0
    %200 = vmatpush.xpose.msra.mxu0 0.0
    %201 = vmatpush.xpose.msra.mxu0 0.0
    %202 = vmatpush.xpose.msra.mxu0 0.0
    %203 = vmatpush.xpose.msra.mxu0 0.0
    %204 = vmatpush.xpose.msra.mxu0 0.0
    %205 = vmatpush.xpose.msra.mxu0 0.0
    %206 = vmatpush.xpose.msra.mxu0 0.0
    %207 = vmatpush.xpose.msra.mxu0 0.0
    %208 = vmatpush.xpose.msra.mxu0 0.0
    %209 = vmatpush.xpose.msra.mxu0 %v192
    %210 = vmatmul.f32.gmra.mxu0 %v190
    %v211 = vpop.f32.mrf.mxu0
    %v212 = vadd.f32 0.0, %v211
    %213 = vdwg.mxu0
    %214 = vrot.lane.b32.xlu0 %v93, 120
    %v215 = vpop.permute.xlu0 %214
    %v216 = vsel %vm111, %v93, 0
    %v218 = vsel %vm111, %v215, 0
    %220 = vmatpush.xpose.msra.mxu0 0.0
    %221 = vmatpush.xpose.msra.mxu0 0.0
    %222 = vmatpush.xpose.msra.mxu0 0.0
    %223 = vmatpush.xpose.msra.mxu0 0.0
    %224 = vmatpush.xpose.msra.mxu0 0.0
    %225 = vmatpush.xpose.msra.mxu0 0.0
    %226 = vmatpush.xpose.msra.mxu0 0.0
    %227 = vmatpush.xpose.msra.mxu0 0.0
    %228 = vmatpush.xpose.msra.mxu0 0.0
    %229 = vmatpush.xpose.msra.mxu0 0.0
    %230 = vmatpush.xpose.msra.mxu0 0.0
    %231 = vmatpush.xpose.msra.mxu0 0.0
    %232 = vmatpush.xpose.msra.mxu0 0.0
    %233 = vmatpush.xpose.msra.mxu0 0.0
    %234 = vmatpush.xpose.msra.mxu0 0.0
    %235 = vmatpush.xpose.msra.mxu0 %v218
    %236 = vmatmul.f32.gmra.mxu0 %v216
    %v237 = vpop.f32.mrf.mxu0
    %v238 = vadd.f32 0.0, %v237
    %239 = vdwg.mxu0
    %240 = vrot.lane.b32.xlu0 %v100, 120
    %v241 = vpop.permute.xlu0 %240
    %v242 = vsel %vm111, %v100, 0
    %v244 = vsel %vm111, %v241, 0
    %246 = vmatpush.xpose.msra.mxu0 0.0
    %247 = vmatpush.xpose.msra.mxu0 0.0
    %248 = vmatpush.xpose.msra.mxu0 0.0
    %249 = vmatpush.xpose.msra.mxu0 0.0
    %250 = vmatpush.xpose.msra.mxu0 0.0
    %251 = vmatpush.xpose.msra.mxu0 0.0
    %252 = vmatpush.xpose.msra.mxu0 0.0
    %253 = vmatpush.xpose.msra.mxu0 0.0
    %254 = vmatpush.xpose.msra.mxu0 0.0
    %255 = vmatpush.xpose.msra.mxu0 0.0
    %256 = vmatpush.xpose.msra.mxu0 0.0
    %257 = vmatpush.xpose.msra.mxu0 0.0
    %258 = vmatpush.xpose.msra.mxu0 0.0
    %259 = vmatpush.xpose.msra.mxu0 0.0
    %260 = vmatpush.xpose.msra.mxu0 0.0
    %261 = vmatpush.xpose.msra.mxu0 %v244
    %262 = vmatmul.f32.gmra.mxu0 %v242
    %v263 = vpop.f32.mrf.mxu0
    %v264 = vadd.f32 0.0, %v263
    %265 = vdwg.mxu0
    %266 = vrot.lane.b32.xlu0 %v104, 120
    %v267 = vpop.permute.xlu0 %266
    %v268 = vsel %vm111, %v104, 0
    %v270 = vsel %vm111, %v267, 0
    %272 = vmatpush.xpose.msra.mxu0 0.0
    %273 = vmatpush.xpose.msra.mxu0 0.0
    %274 = vmatpush.xpose.msra.mxu0 0.0
    %275 = vmatpush.xpose.msra.mxu0 0.0
    %276 = vmatpush.xpose.msra.mxu0 0.0
    %277 = vmatpush.xpose.msra.mxu0 0.0
    %278 = vmatpush.xpose.msra.mxu0 0.0
    %279 = vmatpush.xpose.msra.mxu0 0.0
    %280 = vmatpush.xpose.msra.mxu0 0.0
    %281 = vmatpush.xpose.msra.mxu0 0.0
    %282 = vmatpush.xpose.msra.mxu0 0.0
    %283 = vmatpush.xpose.msra.mxu0 0.0
    %284 = vmatpush.xpose.msra.mxu0 0.0
    %285 = vmatpush.xpose.msra.mxu0 0.0
    %286 = vmatpush.xpose.msra.mxu0 0.0
    %287 = vmatpush.xpose.msra.mxu0 %v270
    %288 = vmatmul.f32.gmra.mxu0 %v268
    %v289 = vpop.f32.mrf.mxu0
    %v290 = vadd.f32 0.0, %v289
    %291 = vdwg.mxu0
    %292 = vrot.lane.b32.xlu0 %v108, 120
    %v293 = vpop.permute.xlu0 %292
    %v294 = vsel %vm111, %v108, 0
    %v296 = vsel %vm111, %v293, 0
    %298 = vmatpush.xpose.msra.mxu0 0.0
    %299 = vmatpush.xpose.msra.mxu0 0.0
    %300 = vmatpush.xpose.msra.mxu0 0.0
    %301 = vmatpush.xpose.msra.mxu0 0.0
    %302 = vmatpush.xpose.msra.mxu0 0.0
    %303 = vmatpush.xpose.msra.mxu0 0.0
    %304 = vmatpush.xpose.msra.mxu0 0.0
    %305 = vmatpush.xpose.msra.mxu0 0.0
    %306 = vmatpush.xpose.msra.mxu0 0.0
    %307 = vmatpush.xpose.msra.mxu0 0.0
    %308 = vmatpush.xpose.msra.mxu0 0.0
    %309 = vmatpush.xpose.msra.mxu0 0.0
    %310 = vmatpush.xpose.msra.mxu0 0.0
    %311 = vmatpush.xpose.msra.mxu0 0.0
    %312 = vmatpush.xpose.msra.mxu0 0.0
    %313 = vmatpush.xpose.msra.mxu0 %v296
    %314 = vmatmul.f32.gmra.mxu0 %v294
    %v315 = vpop.f32.mrf.mxu0
    %v316 = vadd.f32 0.0, %v315
    %317 = vdwg.mxu0
    %v318 = vmul.f32 %v134, 0.35355338
    %v319 = vmul.f32 %v160, 0.35355338
    %v320 = vmul.f32 %v186, 0.35355338
    %v321 = vmul.f32 %v212, 0.35355338
    %v322 = vmul.f32 %v238, 0.35355338
    %v323 = vmul.f32 %v264, 0.35355338
    %v324 = vmul.f32 %v290, 0.35355338
    %v325 = vmul.f32 %v316, 0.35355338
    %v326 = vld [vmem:[#allocation5] sm:$0xf]
    %v327 = vld [vmem:[#allocation5 + $0x4] sm:$0xf]
    %v328 = vunpack.c.l.bf16 %v326
    %v329 = vunpack.c.l.bf16 %v327
    %vm330 = vcmp.gt.f32.partialorder %v328, 0.0
    %vm331 = vcmp.gt.f32.partialorder %v329, 0.0
    %v332 = vsel %vm330, 1, 0
    %v333 = vsel %vm331, 1, 0
    %vm334 = vcmp.eq.s32.totalorder %v332, 1
    %vm335 = vcmp.eq.s32.totalorder %v333, 1
    %v336 = vsel %vm334, -1e+09, %v318
    %v337 = vsel %vm334, -1e+09, %v319
    %v338 = vsel %vm334, -1e+09, %v320
    %v339 = vsel %vm334, -1e+09, %v321
    %v340 = vsel %vm335, -1e+09, %v322
    %v341 = vsel %vm335, -1e+09, %v323
    %v342 = vsel %vm335, -1e+09, %v324
    %v343 = vsel %vm335, -1e+09, %v325
    %v344 = vsel %vm111, %v336, -inf
    %345 = vmax.xlane.f32.xlu0 %v344
    %v346 = vpop.xlane.xlu0 %345
    %v347 = vsel %vm111, %v337, -inf
    %348 = vmax.xlane.f32.xlu0 %v347
    %v349 = vpop.xlane.xlu0 %348
    %v350 = vsel %vm111, %v338, -inf
    %351 = vmax.xlane.f32.xlu0 %v350
    %v352 = vpop.xlane.xlu0 %351
    %v353 = vsel %vm111, %v339, -inf
    %354 = vmax.xlane.f32.xlu0 %v353
    %v355 = vpop.xlane.xlu0 %354
    %v356 = vsel %vm111, %v340, -inf
    %357 = vmax.xlane.f32.xlu0 %v356
    %v358 = vpop.xlane.xlu0 %357
    %v359 = vsel %vm111, %v341, -inf
    %360 = vmax.xlane.f32.xlu0 %v359
    %v361 = vpop.xlane.xlu0 %360
    %v362 = vsel %vm111, %v342, -inf
    %363 = vmax.xlane.f32.xlu0 %v362
    %v364 = vpop.xlane.xlu0 %363
    %v365 = vsel %vm111, %v343, -inf
    %366 = vmax.xlane.f32.xlu0 %v365
    %v367 = vpop.xlane.xlu0 %366
    %v368 = vsub.f32 %v336, %v346
    %v369 = vsub.f32 %v337, %v349
    %v370 = vsub.f32 %v338, %v352
    %v371 = vsub.f32 %v339, %v355
    %v372 = vsub.f32 %v340, %v358
    %v373 = vsub.f32 %v341, %v361
    %v374 = vsub.f32 %v342, %v364
    %v375 = vsub.f32 %v343, %v367
    %v376 = vmul.f32 %v368, 1.442695
    %v377 = vpow.pop %v376
    %v378 = vmul.f32 %v369, 1.442695
    %v379 = vpow.pop %v378
    %v380 = vmul.f32 %v370, 1.442695
    %v381 = vpow.pop %v380
    %v382 = vmul.f32 %v371, 1.442695
    %v383 = vpow.pop %v382
    %v384 = vmul.f32 %v372, 1.442695
    %v385 = vpow.pop %v384
    %v386 = vmul.f32 %v373, 1.442695
    %v387 = vpow.pop %v386
    %v388 = vmul.f32 %v374, 1.442695
    %v389 = vpow.pop %v388
    %v390 = vmul.f32 %v375, 1.442695
    %v391 = vpow.pop %v390
    %v392 = vsel %vm111, %v377, 0.0
    %393 = vadd.xlane.f32.xlu0 %v392
    %v394 = vpop.xlane.xlu0 %393
    %v395 = vsel %vm111, %v379, 0.0
    %396 = vadd.xlane.f32.xlu0 %v395
    %v397 = vpop.xlane.xlu0 %396
    %v398 = vsel %vm111, %v381, 0.0
    %399 = vadd.xlane.f32.xlu0 %v398
    %v400 = vpop.xlane.xlu0 %399
    %v401 = vsel %vm111, %v383, 0.0
    %402 = vadd.xlane.f32.xlu0 %v401
    %v403 = vpop.xlane.xlu0 %402
    %v404 = vsel %vm111, %v385, 0.0
    %405 = vadd.xlane.f32.xlu0 %v404
    %v406 = vpop.xlane.xlu0 %405
    %v407 = vsel %vm111, %v387, 0.0
    %408 = vadd.xlane.f32.xlu0 %v407
    %v409 = vpop.xlane.xlu0 %408
    %v410 = vsel %vm111, %v389, 0.0
    %411 = vadd.xlane.f32.xlu0 %v410
    %v412 = vpop.xlane.xlu0 %411
    %v413 = vsel %vm111, %v391, 0.0
    %414 = vadd.xlane.f32.xlu0 %v413
    %v415 = vpop.xlane.xlu0 %414
    %v416 = vrcp.pop %v394
    %v417 = vmul.f32 %v394, %v416
    %v418 = vsub.f32 1.0, %v417
    %v419 = vmul.f32 %v416, %v418
    %v420 = vadd.f32 %v416, %v419
    %vm421 = vweird.f32 %v394
    %vm422 = vweird.f32 %v416
    %vm423 = vmor %vm421, %vm422
    %v424 = vsel %vm423, %v416, %v420
    %v425 = vand.u32 2147483647, %v394
    %vm426 = vcmp.eq.f32.partialorder %v425, 8.507059e+37
    %v427 = vand.u32 %v394, 2147483648
    %v428 = vor.u32 1.1754944e-38, %v427
    %v429 = vsel %vm426, %v428, %v424
    %v430 = vrcp.pop %v397
    %v431 = vmul.f32 %v397, %v430
    %v432 = vsub.f32 1.0, %v431
    %v433 = vmul.f32 %v430, %v432
    %v434 = vadd.f32 %v430, %v433
    %vm435 = vweird.f32 %v397
    %vm436 = vweird.f32 %v430
    %vm437 = vmor %vm435, %vm436
    %v438 = vsel %vm437, %v430, %v434
    %v439 = vand.u32 2147483647, %v397
    %vm440 = vcmp.eq.f32.partialorder %v439, 8.507059e+37
    %v441 = vand.u32 %v397, 2147483648
    %v442 = vor.u32 1.1754944e-38, %v441
    %v443 = vsel %vm440, %v442, %v438
    %v444 = vrcp.pop %v400
    %v445 = vmul.f32 %v400, %v444
    %v446 = vsub.f32 1.0, %v445
    %v447 = vmul.f32 %v444, %v446
    %v448 = vadd.f32 %v444, %v447
    %vm449 = vweird.f32 %v400
    %vm450 = vweird.f32 %v444
    %vm451 = vmor %vm449, %vm450
    %v452 = vsel %vm451, %v444, %v448
    %v453 = vand.u32 2147483647, %v400
    %vm454 = vcmp.eq.f32.partialorder %v453, 8.507059e+37
    %v455 = vand.u32 %v400, 2147483648
    %v456 = vor.u32 1.1754944e-38, %v455
    %v457 = vsel %vm454, %v456, %v452
    %v458 = vrcp.pop %v403
    %v459 = vmul.f32 %v403, %v458
    %v460 = vsub.f32 1.0, %v459
    %v461 = vmul.f32 %v458, %v460
    %v462 = vadd.f32 %v458, %v461
    %vm463 = vweird.f32 %v403
    %vm464 = vweird.f32 %v458
    %vm465 = vmor %vm463, %vm464
    %v466 = vsel %vm465, %v458, %v462
    %v467 = vand.u32 2147483647, %v403
    %vm468 = vcmp.eq.f32.partialorder %v467, 8.507059e+37
    %v469 = vand.u32 %v403, 2147483648
    %v470 = vor.u32 1.1754944e-38, %v469
    %v471 = vsel %vm468, %v470, %v466
    %v472 = vrcp.pop %v406
    %v473 = vmul.f32 %v406, %v472
    %v474 = vsub.f32 1.0, %v473
    %v475 = vmul.f32 %v472, %v474
    %v476 = vadd.f32 %v472, %v475
    %vm477 = vweird.f32 %v406
    %vm478 = vweird.f32 %v472
    %vm479 = vmor %vm477, %vm478
    %v480 = vsel %vm479, %v472, %v476
    %v481 = vand.u32 2147483647, %v406
    %vm482 = vcmp.eq.f32.partialorder %v481, 8.507059e+37
    %v483 = vand.u32 %v406, 2147483648
    %v484 = vor.u32 1.1754944e-38, %v483
    %v485 = vsel %vm482, %v484, %v480
    %v486 = vrcp.pop %v409
    %v487 = vmul.f32 %v409, %v486
    %v488 = vsub.f32 1.0, %v487
    %v489 = vmul.f32 %v486, %v488
    %v490 = vadd.f32 %v486, %v489
    %vm491 = vweird.f32 %v409
    %vm492 = vweird.f32 %v486
    %vm493 = vmor %vm491, %vm492
    %v494 = vsel %vm493, %v486, %v490
    %v495 = vand.u32 2147483647, %v409
    %vm496 = vcmp.eq.f32.partialorder %v495, 8.507059e+37
    %v497 = vand.u32 %v409, 2147483648
    %v498 = vor.u32 1.1754944e-38, %v497
    %v499 = vsel %vm496, %v498, %v494
    %v500 = vrcp.pop %v412
    %v501 = vmul.f32 %v412, %v500
    %v502 = vsub.f32 1.0, %v501
    %v503 = vmul.f32 %v500, %v502
    %v504 = vadd.f32 %v500, %v503
    %vm505 = vweird.f32 %v412
    %vm506 = vweird.f32 %v500
    %vm507 = vmor %vm505, %vm506
    %v508 = vsel %vm507, %v500, %v504
    %v509 = vand.u32 2147483647, %v412
    %vm510 = vcmp.eq.f32.partialorder %v509, 8.507059e+37
    %v511 = vand.u32 %v412, 2147483648
    %v512 = vor.u32 1.1754944e-38, %v511
    %v513 = vsel %vm510, %v512, %v508
    %v514 = vrcp.pop %v415
    %v515 = vmul.f32 %v415, %v514
    %v516 = vsub.f32 1.0, %v515
    %v517 = vmul.f32 %v514, %v516
    %v518 = vadd.f32 %v514, %v517
    %vm519 = vweird.f32 %v415
    %vm520 = vweird.f32 %v514
    %vm521 = vmor %vm519, %vm520
    %v522 = vsel %vm521, %v514, %v518
    %v523 = vand.u32 2147483647, %v415
    %vm524 = vcmp.eq.f32.partialorder %v523, 8.507059e+37
    %v525 = vand.u32 %v415, 2147483648
    %v526 = vor.u32 1.1754944e-38, %v525
    %v527 = vsel %vm524, %v526, %v522
    %v528 = vmul.f32 %v377, %v429
    %v529 = vmul.f32 %v379, %v443
    %v530 = vmul.f32 %v381, %v457
    %v531 = vmul.f32 %v383, %v471
    %v532 = vmul.f32 %v385, %v485
    %v533 = vmul.f32 %v387, %v499
    %v534 = vmul.f32 %v389, %v513
    %v535 = vmul.f32 %v391, %v527
    %536 = vst.msk [vmem:[#allocation8] sm:$0xff] %vm111, %v528
    %537 = vst.msk [vmem:[#allocation8 + $0x8] sm:$0xff] %vm111, %v529
    %538 = vst.msk [vmem:[#allocation8 + $0x10] sm:$0xff] %vm111, %v530
    %539 = vst.msk [vmem:[#allocation8 + $0x18] sm:$0xff] %vm111, %v531
    %540 = vst.msk [vmem:[#allocation8 + $0x20] sm:$0xff] %vm111, %v532
    %541 = vst.msk [vmem:[#allocation8 + $0x28] sm:$0xff] %vm111, %v533
    %542 = vst.msk [vmem:[#allocation8 + $0x30] sm:$0xff] %vm111, %v534
    %543 = vst.msk [vmem:[#allocation8 + $0x38] sm:$0xff] %vm111, %v535
    %544 = vrot.lane.b32.xlu0 %v90, 112
    %v545 = vpop.permute.xlu0 %544
    %v548 = vsel %vm111, %v528, 0
    %550 = vmatpush.msra.mxu0 0.0
    %551 = vmatpush.msra.mxu0 0.0
    %552 = vmatpush.msra.mxu0 0.0
    %553 = vmatpush.msra.mxu0 0.0
    %554 = vmatpush.msra.mxu0 0.0
    %555 = vmatpush.msra.mxu0 0.0
    %556 = vmatpush.msra.mxu0 0.0
    %557 = vmatpush.msra.mxu0 0.0
    %558 = vmatpush.msra.mxu0 0.0
    %559 = vmatpush.msra.mxu0 0.0
    %560 = vmatpush.msra.mxu0 0.0
    %561 = vmatpush.msra.mxu0 0.0
    %562 = vmatpush.msra.mxu0 0.0
    %563 = vmatpush.msra.mxu0 0.0
    %564 = vmatpush.msra.mxu0 0.0
    %565 = vmatpush.msra.mxu0 %v545
    %566 = vmatmul.f32.gmra.mxu0 %v548
    %v567 = vpop.f32.mrf.mxu0
    %v568 = vadd.f32 0.0, %v567
    %569 = vdwg.mxu0
    %570 = vrot.lane.b32.xlu0 %v98, 112
    %v571 = vpop.permute.xlu0 %570
    %v574 = vsel %vm111, %v529, 0
    %576 = vmatpush.msra.mxu0 0.0
    %577 = vmatpush.msra.mxu0 0.0
    %578 = vmatpush.msra.mxu0 0.0
    %579 = vmatpush.msra.mxu0 0.0
    %580 = vmatpush.msra.mxu0 0.0
    %581 = vmatpush.msra.mxu0 0.0
    %582 = vmatpush.msra.mxu0 0.0
    %583 = vmatpush.msra.mxu0 0.0
    %584 = vmatpush.msra.mxu0 0.0
    %585 = vmatpush.msra.mxu0 0.0
    %586 = vmatpush.msra.mxu0 0.0
    %587 = vmatpush.msra.mxu0 0.0
    %588 = vmatpush.msra.mxu0 0.0
    %589 = vmatpush.msra.mxu0 0.0
    %590 = vmatpush.msra.mxu0 0.0
    %591 = vmatpush.msra.mxu0 %v571
    %592 = vmatmul.f32.gmra.mxu0 %v574
    %v593 = vpop.f32.mrf.mxu0
    %v594 = vadd.f32 0.0, %v593
    %595 = vdwg.mxu0
    %596 = vrot.lane.b32.xlu0 %v102, 112
    %v597 = vpop.permute.xlu0 %596
    %v600 = vsel %vm111, %v530, 0
    %602 = vmatpush.msra.mxu0 0.0
    %603 = vmatpush.msra.mxu0 0.0
    %604 = vmatpush.msra.mxu0 0.0
    %605 = vmatpush.msra.mxu0 0.0
    %606 = vmatpush.msra.mxu0 0.0
    %607 = vmatpush.msra.mxu0 0.0
    %608 = vmatpush.msra.mxu0 0.0
    %609 = vmatpush.msra.mxu0 0.0
    %610 = vmatpush.msra.mxu0 0.0
    %611 = vmatpush.msra.mxu0 0.0
    %612 = vmatpush.msra.mxu0 0.0
    %613 = vmatpush.msra.mxu0 0.0
    %614 = vmatpush.msra.mxu0 0.0
    %615 = vmatpush.msra.mxu0 0.0
    %616 = vmatpush.msra.mxu0 0.0
    %617 = vmatpush.msra.mxu0 %v597
    %618 = vmatmul.f32.gmra.mxu0 %v600
    %v619 = vpop.f32.mrf.mxu0
    %v620 = vadd.f32 0.0, %v619
    %621 = vdwg.mxu0
    %622 = vrot.lane.b32.xlu0 %v106, 112
    %v623 = vpop.permute.xlu0 %622
    %v626 = vsel %vm111, %v531, 0
    %628 = vmatpush.msra.mxu0 0.0
    %629 = vmatpush.msra.mxu0 0.0
    %630 = vmatpush.msra.mxu0 0.0
    %631 = vmatpush.msra.mxu0 0.0
    %632 = vmatpush.msra.mxu0 0.0
    %633 = vmatpush.msra.mxu0 0.0
    %634 = vmatpush.msra.mxu0 0.0
    %635 = vmatpush.msra.mxu0 0.0
    %636 = vmatpush.msra.mxu0 0.0
    %637 = vmatpush.msra.mxu0 0.0
    %638 = vmatpush.msra.mxu0 0.0
    %639 = vmatpush.msra.mxu0 0.0
    %640 = vmatpush.msra.mxu0 0.0
    %641 = vmatpush.msra.mxu0 0.0
    %642 = vmatpush.msra.mxu0 0.0
    %643 = vmatpush.msra.mxu0 %v623
    %644 = vmatmul.f32.gmra.mxu0 %v626
    %v645 = vpop.f32.mrf.mxu0
    %v646 = vadd.f32 0.0, %v645
    %647 = vdwg.mxu0
    %648 = vrot.lane.b32.xlu0 %v93, 112
    %v649 = vpop.permute.xlu0 %648
    %v652 = vsel %vm111, %v532, 0
    %654 = vmatpush.msra.mxu0 0.0
    %655 = vmatpush.msra.mxu0 0.0
    %656 = vmatpush.msra.mxu0 0.0
    %657 = vmatpush.msra.mxu0 0.0
    %658 = vmatpush.msra.mxu0 0.0
    %659 = vmatpush.msra.mxu0 0.0
    %660 = vmatpush.msra.mxu0 0.0
    %661 = vmatpush.msra.mxu0 0.0
    %662 = vmatpush.msra.mxu0 0.0
    %663 = vmatpush.msra.mxu0 0.0
    %664 = vmatpush.msra.mxu0 0.0
    %665 = vmatpush.msra.mxu0 0.0
    %666 = vmatpush.msra.mxu0 0.0
    %667 = vmatpush.msra.mxu0 0.0
    %668 = vmatpush.msra.mxu0 0.0
    %669 = vmatpush.msra.mxu0 %v649
    %670 = vmatmul.f32.gmra.mxu0 %v652
    %v671 = vpop.f32.mrf.mxu0
    %v672 = vadd.f32 0.0, %v671
    %673 = vdwg.mxu0
    %674 = vrot.lane.b32.xlu0 %v100, 112
    %v675 = vpop.permute.xlu0 %674
    %v678 = vsel %vm111, %v533, 0
    %680 = vmatpush.msra.mxu0 0.0
    %681 = vmatpush.msra.mxu0 0.0
    %682 = vmatpush.msra.mxu0 0.0
    %683 = vmatpush.msra.mxu0 0.0
    %684 = vmatpush.msra.mxu0 0.0
    %685 = vmatpush.msra.mxu0 0.0
    %686 = vmatpush.msra.mxu0 0.0
    %687 = vmatpush.msra.mxu0 0.0
    %688 = vmatpush.msra.mxu0 0.0
    %689 = vmatpush.msra.mxu0 0.0
    %690 = vmatpush.msra.mxu0 0.0
    %691 = vmatpush.msra.mxu0 0.0
    %692 = vmatpush.msra.mxu0 0.0
    %693 = vmatpush.msra.mxu0 0.0
    %694 = vmatpush.msra.mxu0 0.0
    %695 = vmatpush.msra.mxu0 %v675
    %696 = vmatmul.f32.gmra.mxu0 %v678
    %v697 = vpop.f32.mrf.mxu0
    %v698 = vadd.f32 0.0, %v697
    %699 = vdwg.mxu0
    %700 = vrot.lane.b32.xlu0 %v104, 112
    %v701 = vpop.permute.xlu0 %700
    %v704 = vsel %vm111, %v534, 0
    %706 = vmatpush.msra.mxu0 0.0
    %707 = vmatpush.msra.mxu0 0.0
    %708 = vmatpush.msra.mxu0 0.0
    %709 = vmatpush.msra.mxu0 0.0
    %710 = vmatpush.msra.mxu0 0.0
    %711 = vmatpush.msra.mxu0 0.0
    %712 = vmatpush.msra.mxu0 0.0
    %713 = vmatpush.msra.mxu0 0.0
    %714 = vmatpush.msra.mxu0 0.0
    %715 = vmatpush.msra.mxu0 0.0
    %716 = vmatpush.msra.mxu0 0.0
    %717 = vmatpush.msra.mxu0 0.0
    %718 = vmatpush.msra.mxu0 0.0
    %719 = vmatpush.msra.mxu0 0.0
    %720 = vmatpush.msra.mxu0 0.0
    %721 = vmatpush.msra.mxu0 %v701
    %722 = vmatmul.f32.gmra.mxu0 %v704
    %v723 = vpop.f32.mrf.mxu0
    %v724 = vadd.f32 0.0, %v723
    %725 = vdwg.mxu0
    %726 = vrot.lane.b32.xlu0 %v108, 112
    %v727 = vpop.permute.xlu0 %726
    %v730 = vsel %vm111, %v535, 0
    %732 = vmatpush.msra.mxu0 0.0
    %733 = vmatpush.msra.mxu0 0.0
    %734 = vmatpush.msra.mxu0 0.0
    %735 = vmatpush.msra.mxu0 0.0
    %736 = vmatpush.msra.mxu0 0.0
    %737 = vmatpush.msra.mxu0 0.0
    %738 = vmatpush.msra.mxu0 0.0
    %739 = vmatpush.msra.mxu0 0.0
    %740 = vmatpush.msra.mxu0 0.0
    %741 = vmatpush.msra.mxu0 0.0
    %742 = vmatpush.msra.mxu0 0.0
    %743 = vmatpush.msra.mxu0 0.0
    %744 = vmatpush.msra.mxu0 0.0
    %745 = vmatpush.msra.mxu0 0.0
    %746 = vmatpush.msra.mxu0 0.0
    %747 = vmatpush.msra.mxu0 %v727
    %748 = vmatmul.f32.gmra.mxu0 %v730
    %v749 = vpop.f32.mrf.mxu0
    %v750 = vadd.f32 0.0, %v749
    %751 = vdwg.mxu0
    %754 = vrot.lane.b32.xlu0 %v594, 8
    %v755 = vpop.permute.xlu0 %754
    %756 = vrot.lane.b32.xlu0 %v698, 8
    %v757 = vpop.permute.xlu0 %756
    %762 = vrot.lane.b32.xlu0 %v620, 16
    %v763 = vpop.permute.xlu0 %762
    %764 = vrot.lane.b32.xlu0 %v724, 16
    %v765 = vpop.permute.xlu0 %764
    %770 = vrot.lane.b32.xlu0 %v646, 24
    %v771 = vpop.permute.xlu0 %770
    %772 = vrot.lane.b32.xlu0 %v750, 24
    %v773 = vpop.permute.xlu0 %772
    %v776 = vsel %vm111, %v568, %v755
    %v777 = vsel %vm111, %v672, %v757
    %vm778 = vcmask 130048
    %v779 = vsel %vm778, %v776, %v763
    %v780 = vsel %vm778, %v777, %v765
    %vm781 = vcmask 195584
    %v782 = vsel %vm781, %v779, %v771
    %v783 = vsel %vm781, %v780, %v773
    %v784 = vld [vmem:[%s3] sm:$0xff]
    %v785 = vld [vmem:[%s3 + $0x8] sm:$0xff]
    %v786 = vld [vmem:[%s3 + $0x10] sm:$0xff]
    %v787 = vld [vmem:[%s3 + $0x18] sm:$0xff]
    %v789 = vsel %vm65, %v782, 0
    %v792 = vsel %vm65, %v783, 0
    %794 = vmatpush.msra.mxu0 0.0
    %795 = vmatpush.msra.mxu0 0.0
    %796 = vmatpush.msra.mxu0 0.0
    %797 = vmatpush.msra.mxu0 0.0
    %798 = vmatpush.msra.mxu0 0.0
    %799 = vmatpush.msra.mxu0 0.0
    %800 = vmatpush.msra.mxu0 0.0
    %801 = vmatpush.msra.mxu0 0.0
    %802 = vmatpush.msra.mxu0 0.0
    %803 = vmatpush.msra.mxu0 0.0
    %804 = vmatpush.msra.mxu0 0.0
    %805 = vmatpush.msra.mxu0 0.0
    %806 = vmatpush.msra.mxu0 %v787
    %807 = vmatpush.msra.mxu0 %v786
    %808 = vmatpush.msra.mxu0 %v785
    %809 = vmatpush.msra.mxu0 %v784
    %810 = vmatmul.f32.gmra.mxu0 %v789
    %v811 = vpop.f32.mrf.mxu0
    %v812 = vadd.f32 %v59, %v811
    %813 = vmatmul.f32.gmra.mxu0 %v792
    %v814 = vpop.f32.mrf.mxu0
    %v815 = vadd.f32 %v60, %v814
    %816 = vdwg.mxu0
    %v817 = vsel %vm65, %v812, 0.0
    %818 = vadd.xlane.f32.xlu0 %v817
    %v819 = vpop.xlane.xlu0 %818
    %v820 = vsel %vm65, %v815, 0.0
    %821 = vadd.xlane.f32.xlu0 %v820
    %v822 = vpop.xlane.xlu0 %821
    %v823 = vrcp.pop 32.0
    %v824 = vmul.f32 32.0, %v823
    %v825 = vsub.f32 1.0, %v824
    %v826 = vmul.f32 %v823, %v825
    %v827 = vadd.f32 %v823, %v826
    %vm828 = vweird.f32 %v823
    %v829 = vsel %vm828, %v823, %v827
    %v830 = vmul.f32 %v819, %v829
    %v831 = vmul.f32 %v822, %v829
    %v832 = vsub.f32 %v812, %v830
    %v833 = vsub.f32 %v815, %v831
    %v834 = vmul.f32 %v832, %v832
    %v835 = vmul.f32 %v833, %v833
    %v836 = vsel %vm65, %v834, 0.0
    %837 = vadd.xlane.f32.xlu0 %v836
    %v838 = vpop.xlane.xlu0 %837
    %v839 = vsel %vm65, %v835, 0.0
    %840 = vadd.xlane.f32.xlu0 %v839
    %v841 = vpop.xlane.xlu0 %840
    %v842 = vmul.f32 %v838, %v829
    %v843 = vmul.f32 %v841, %v829
    %v844 = vadd.f32 %v842, 1e-05
    %v845 = vadd.f32 %v843, 1e-05
    %v846 = vrsqrt.pop %v844
    %v847 = vmul.f32 %v846, %v844
    %v848 = vmul.f32 %v847, %v846
    %v849 = vmul.f32 0.5, %v848
    %v850 = vsub.f32 1.5, %v849
    %v851 = vmul.f32 %v846, %v850
    %vm852 = vweird.f32 %v844
    %vm853 = vweird.f32 %v846
    %vm854 = vmor %vm852, %vm853
    %v855 = vsel %vm854, %v846, %v851
    %v856 = vrsqrt.pop %v845
    %v857 = vmul.f32 %v856, %v845
    %v858 = vmul.f32 %v857, %v856
    %v859 = vmul.f32 0.5, %v858
    %v860 = vsub.f32 1.5, %v859
    %v861 = vmul.f32 %v856, %v860
    %vm862 = vweird.f32 %v845
    %vm863 = vweird.f32 %v856
    %vm864 = vmor %vm862, %vm863
    %v865 = vsel %vm864, %v856, %v861
    %v866 = vmul.f32 %v832, %v855
    %v867 = vmul.f32 %v833, %v865
    %v868 = vld [vmem:[%s4] sm:$0xff]
    %v869 = vld [vmem:[%s4 + $0x8] sm:$0xff]
    %v870 = vld [vmem:[%s4 + $0x10] sm:$0xff]
    %v871 = vld [vmem:[%s4 + $0x18] sm:$0xff]
    %v873 = vsel %vm65, %v866, 0
    %v876 = vsel %vm65, %v867, 0
    %878 = vmatpush.msra.mxu0 0.0
    %879 = vmatpush.msra.mxu0 0.0
    %880 = vmatpush.msra.mxu0 0.0
    %881 = vmatpush.msra.mxu0 0.0
    %882 = vmatpush.msra.mxu0 0.0
    %883 = vmatpush.msra.mxu0 0.0
    %884 = vmatpush.msra.mxu0 0.0
    %885 = vmatpush.msra.mxu0 0.0
    %886 = vmatpush.msra.mxu0 0.0
    %887 = vmatpush.msra.mxu0 0.0
    %888 = vmatpush.msra.mxu0 0.0
    %889 = vmatpush.msra.mxu0 0.0
    %890 = vmatpush.msra.mxu0 %v871
    %891 = vmatpush.msra.mxu0 %v870
    %892 = vmatpush.msra.mxu0 %v869
    %893 = vmatpush.msra.mxu0 %v868
    %894 = vmatmul.f32.gmra.mxu0 %v873
    %v895 = vpop.f32.mrf.mxu0
    %v896 = vadd.f32 0.0, %v895
    %897 = vmatmul.f32.gmra.mxu0 %v876
    %v898 = vpop.f32.mrf.mxu0
    %v899 = vadd.f32 0.0, %v898
    %900 = vdwg.mxu0
    %v901 = vmax.f32 %v896, 0.0
    %v902 = vmax.f32 %v899, 0.0
    %v903 = vld [vmem:[%s5] sm:$0xff]
    %v904 = vld [vmem:[%s5 + $0x8] sm:$0xff]
    %v905 = vld [vmem:[%s5 + $0x10] sm:$0xff]
    %v906 = vld [vmem:[%s5 + $0x18] sm:$0xff]
    %v907 = vld [vmem:[%s5 + $0x20] sm:$0xff]
    %v908 = vld [vmem:[%s5 + $0x28] sm:$0xff]
    %v909 = vld [vmem:[%s5 + $0x30] sm:$0xff]
    %v910 = vld [vmem:[%s5 + $0x38] sm:$0xff]
    %vm911 = vcmask 523264
    %v913 = vsel %vm911, %v901, 0
    %v916 = vsel %vm911, %v902, 0
    %918 = vmatpush.msra.mxu0 0.0
    %919 = vmatpush.msra.mxu0 0.0
    %920 = vmatpush.msra.mxu0 0.0
    %921 = vmatpush.msra.mxu0 0.0
    %922 = vmatpush.msra.mxu0 0.0
    %923 = vmatpush.msra.mxu0 0.0
    %924 = vmatpush.msra.mxu0 0.0
    %925 = vmatpush.msra.mxu0 0.0
    %926 = vmatpush.msra.mxu0 %v910
    %927 = vmatpush.msra.mxu0 %v909
    %928 = vmatpush.msra.mxu0 %v908
    %929 = vmatpush.msra.mxu0 %v907
    %930 = vmatpush.msra.mxu0 %v906
    %931 = vmatpush.msra.mxu0 %v905
    %932 = vmatpush.msra.mxu0 %v904
    %933 = vmatpush.msra.mxu0 %v903
    %934 = vmatmul.f32.gmra.mxu0 %v913
    %v935 = vpop.f32.mrf.mxu0
    %v936 = vadd.f32 %v866, %v935
    %937 = vmatmul.f32.gmra.mxu0 %v916
    %v938 = vpop.f32.mrf.mxu0
    %v939 = vadd.f32 %v867, %v938
    %940 = vdwg.mxu0
    %v941 = vsel %vm65, %v936, 0.0
    %942 = vadd.xlane.f32.xlu0 %v941
    %v943 = vpop.xlane.xlu0 %942
    %v944 = vsel %vm65, %v939, 0.0
    %945 = vadd.xlane.f32.xlu0 %v944
    %v946 = vpop.xlane.xlu0 %945
    %v947 = vmul.f32 %v943, %v829
    %v948 = vmul.f32 %v946, %v829
    %v949 = vsub.f32 %v936, %v947
    %v950 = vsub.f32 %v939, %v948
    %v951 = vmul.f32 %v949, %v949
    %v952 = vmul.f32 %v950, %v950
    %v953 = vsel %vm65, %v951, 0.0
    %954 = vadd.xlane.f32.xlu0 %v953
    %v955 = vpop.xlane.xlu0 %954
    %v956 = vsel %vm65, %v952, 0.0
    %957 = vadd.xlane.f32.xlu0 %v956
    %v958 = vpop.xlane.xlu0 %957
    %v959 = vmul.f32 %v955, %v829
    %v960 = vmul.f32 %v958, %v829
    %v961 = vadd.f32 %v959, 1e-05
    %v962 = vadd.f32 %v960, 1e-05
    %v963 = vrsqrt.pop %v961
    %v964 = vmul.f32 %v963, %v961
    %v965 = vmul.f32 %v964, %v963
    %v966 = vmul.f32 0.5, %v965
    %v967 = vsub.f32 1.5, %v966
    %v968 = vmul.f32 %v963, %v967
    %vm969 = vweird.f32 %v961
    %vm970 = vweird.f32 %v963
    %vm971 = vmor %vm969, %vm970
    %v972 = vsel %vm971, %v963, %v968
    %v973 = vrsqrt.pop %v962
    %v974 = vmul.f32 %v973, %v962
    %v975 = vmul.f32 %v974, %v973
    %v976 = vmul.f32 0.5, %v975
    %v977 = vsub.f32 1.5, %v976
    %v978 = vmul.f32 %v973, %v977
    %vm979 = vweird.f32 %v962
    %vm980 = vweird.f32 %v973
    %vm981 = vmor %vm979, %vm980
    %v982 = vsel %vm981, %v973, %v978
    %v983 = vmul.f32 %v949, %v972
    %v984 = vmul.f32 %v950, %v982
    %985 = vst.msk [vmem:[#allocation7] sm:$0xff] %vm65, %v983
    %986 = vst.msk [vmem:[#allocation7 + $0x8] sm:$0xff] %vm65, %v984
    // Predicated region
    $region34: #{tpu_custom_call.1} parent=1 // pred_check
      _
    $region35: #{tpu_custom_call.1} parent=1 // pred_check_branch
      %988 = sbr.rel (0) target = $region37
    $region36: #{tpu_custom_call.1} parent=1 // pred_region
      %990 = vsyncadd [#allocation4], 0
      %s991 = sshll.u32 [#allocation7], 4
      %s992 = int_to_ptr.vmem [resolvable:$true] %s991
      %s993 = sshll.u32 %s6, 4
      %s994 = int_to_ptr.hbm [resolvable:$true] %s993
      %999 = dma.vmem_to_hbm [thread:$0]  %s992, 256, %s994, [#allocation4], 128, 128, 8
    $region37: #{tpu_custom_call.1} parent=1 // pred_fallthru
      _
    // Predicated region
    $region38: #{tpu_custom_call.1} parent=1 // pred_check
      _
    $region39: #{tpu_custom_call.1} parent=1 // pred_check_branch
      %1001 = sbr.rel (0) target = $region41
    $region40: #{tpu_custom_call.1} parent=1 // pred_region
      %1003 = vsyncadd [#allocation9], 0
      %s1004 = sshll.u32 [#allocation8], 4
      %s1005 = int_to_ptr.vmem [resolvable:$true] %s1004
      %s1006 = sshll.u32 %s7, 4
      %s1007 = int_to_ptr.hbm [resolvable:$true] %s1006
      %1012 = dma.vmem_to_hbm [thread:$0]  %s1005, 1024, %s1007, [#allocation9], 128, 128, 8
    $region41: #{tpu_custom_call.1} parent=1 // pred_fallthru
      _
    // Predicated region
    $region42: #{tpu_custom_call.1} parent=1 // pred_check
      _
    $region43: #{tpu_custom_call.1} parent=1 // pred_check_branch
      %1014 = sbr.rel (0) target = $region45
    $region44: #{tpu_custom_call.1} parent=1 // pred_region
      %1016 = dma.done [#allocation4], 256
    $region45: #{tpu_custom_call.1} parent=1 // pred_fallthru
      _
    // Predicated region
    $region46: #{tpu_custom_call.1} parent=1 // pred_check
      _
    $region47: #{tpu_custom_call.1} parent=1 // pred_check_branch
      %1018 = sbr.rel (0) target = $region49
    $region48: #{tpu_custom_call.1} parent=1 // pred_region
      %1020 = dma.done [#allocation9], 1024
    $region49: #{tpu_custom_call.1} parent=1 // pred_fallthru
      _
    %1021 = vsyncpa [#allocation3], 1
    %1022 = vsyncpa [#allocation6], 1
    %1023 = vsyncpa [#allocation4], 1
    %1024 = vsyncpa [#allocation9], 1

</llo_original>
